<compile_context>
chip_gen: v7x
topology: tpu7x:2x2x1
jax: 0.10.0
libtpu: 0.0.40
codegen_flags: <defaults>
</compile_context>

<pallas_src>
import functools

import jax
import jax.numpy as jnp
from jax.experimental import pallas as pl
from jax.experimental.pallas import tpu as pltpu


def _content_loss_kernel(x_ref, t_ref, acc_ref, *, weight, block_rows, lanes):
    """One grid step over the flattened, padded (rows, lanes) view.

    x_ref   : VMEM (block_rows, lanes) input block
    t_ref   : VMEM (block_rows, lanes) target block
    acc_ref : VMEM (8, lanes) f32 output block; resident across the reduction
              axis (same block index for every step of grid axis 1), so it
              doubles as the accumulator.  Scaling/final reduce happen in the
              wrapper.
    """
    step = pl.program_id(1)

    @pl.when(step == 0)
    def _init():
        acc_ref[...] = jnp.zeros_like(acc_ref)

    x = x_ref[...].astype(jnp.float32)
    t = t_ref[...].astype(jnp.float32)
    diff = x * weight - t                     # weight is a compile-time const
    sq = diff * diff
    # Sublane-aligned partial reduce: (block_rows, lanes) -> (8, lanes).
    # block_rows is always a multiple of 8, so the reshape is layout-free and
    # the axis-0 sum is pure VPU adds (fully hidden under the input DMA).
    acc_ref[...] += jnp.sum(sq.reshape(block_rows // 8, 8, lanes), axis=0)


def _round_up(a, b):
    return ((a + b - 1) // b) * b


def content_loss(x, target, weight, *, lanes=512, max_block_bytes=4 << 20,
                 num_splits=2):
    """Pallas ContentLoss forward.

    Returns (input, loss) with loss = mean((input * weight - target)**2).
    `input` is returned untouched, like the PyTorch module (the stateful
    `self.loss` attribute becomes an explicit return value).
    """
    assert x.shape == target.shape, "input/target shape mismatch"
    total = x.size
    itemsize = jnp.dtype(x.dtype).itemsize
    # dtype-aware sublane multiple for the second-to-last block dim.
    sub_mult = {4: 8, 2: 16, 1: 32}.get(itemsize, 8)

    # --- static tiling plan (all Python ints) -------------------------------
    rows_min = -(-total // lanes)                         # rows to cover data
    rows_per_split = _round_up(max(1, -(-rows_min // num_splits)), sub_mult)
    cap_rows = max(sub_mult,
                   (max_block_bytes // (lanes * itemsize)) // sub_mult * sub_mult)
    block_rows = min(cap_rows, rows_per_split)
    steps = -(-rows_per_split // block_rows)              # reduction steps/split
    padded_rows = num_splits * steps * block_rows
    padded_total = padded_rows * lanes

    # --- flatten + zero-pad (zeros contribute 0 to the squared-diff sum) ----
    xf = x.reshape(-1)
    tf = target.reshape(-1)
    pad = padded_total - total
    if pad:
        xf = jnp.pad(xf, (0, pad))
        tf = jnp.pad(tf, (0, pad))
    x2 = xf.reshape(padded_rows, lanes)
    t2 = tf.reshape(padded_rows, lanes)

    kernel = functools.partial(
        _content_loss_kernel,
        weight=float(weight),       # static float -> fold as constant
        block_rows=block_rows,
        lanes=lanes,
    )
    # TODO(synk): if `weight` ever needs to be a traced value, route it back
    # through an SMEM (1,) operand instead of functools.partial.

    partials = pl.pallas_call(
        kernel,
        out_shape=jax.ShapeDtypeStruct((num_splits * 8, lanes), jnp.float32),
        grid=(num_splits, steps),
        in_specs=[
            pl.BlockSpec((block_rows, lanes), lambda c, i: (c * steps + i, 0)),
            pl.BlockSpec((block_rows, lanes), lambda c, i: (c * steps + i, 0)),
        ],
        # Same block index for all `i` -> output stays resident in VMEM across
        # the reduction axis and acts as the accumulator; disjoint per split.
        out_specs=pl.BlockSpec((8, lanes), lambda c, i: (c, 0)),
        compiler_params=pltpu.CompilerParams(
            # axis 0: independent halves of the stream (megacore on v7x),
            # axis 1: reduction with a resident accumulator.
            dimension_semantics=("parallel", "arbitrary"),
            vmem_limit_bytes=48 << 20,
        ),
    )(x2, t2)

    loss = jnp.sum(partials) * (1.0 / float(total))
    return x, loss


if __name__ == "__main__":
    key = jax.random.PRNGKey(0)
    k_x, k_t, k_x2, k_t2 = jax.random.split(key, 4)

    weight = 0.75

    # Case 1: small NCHW feature maps, sizes divisible by 128 (no padding).
    N, C, H, W = 2, 4, 16, 16
    x = jax.random.uniform(k_x, (N, C, H, W), dtype=jnp.float32)
    target_raw = jax.random.uniform(k_t, (N, C, H, W), dtype=jnp.float32)
    target = target_raw * weight       # ContentLoss.__init__: target.detach()*weight

    out, loss = content_loss(x, target, weight)
    out = jax.block_until_ready(out)
    loss = jax.block_until_ready(loss)

    ref_loss = jnp.mean((x * weight - target) ** 2)
    assert out.shape == x.shape and out.dtype == x.dtype
    assert jnp.allclose(out, x)                                    # pass-through
    assert jnp.allclose(loss, ref_loss, atol=1e-6, rtol=1e-5)

    # Case 2: awkward shape (exercises the zero-padding path).
    xb = jax.random.uniform(k_x2, (3, 5, 7, 11), dtype=jnp.float32)
    tb = jax.random.uniform(k_t2, (3, 5, 7, 11), dtype=jnp.float32) * weight
    out_b, loss_b = content_loss(xb, tb, weight)
    loss_b = jax.block_until_ready(loss_b)
    ref_b = jnp.mean((xb * weight - tb) ** 2)
    assert jnp.allclose(out_b, xb)
    assert jnp.allclose(loss_b, ref_b, atol=1e-6, rtol=1e-5)

    print("KERNEL_OK")
</pallas_src>

<mosaic_0001>
module attributes {stable_mosaic.version = 11 : i64} {
  func.func @_content_loss_kernel(%arg0: i32, %arg1: i32, %arg2: memref<8x512xf32, #tpu.memory_space<vmem>>, %arg3: memref<8x512xf32, #tpu.memory_space<vmem>>, %arg4: memref<8x512xf32, #tpu.memory_space<vmem>>) attributes {dimension_semantics = [#tpu.dimension_semantics<parallel>, #tpu.dimension_semantics<arbitrary>], iteration_bounds = array<i64: 2, 1>, scalar_prefetch = 0 : i64, scratch_operands = 0 : i64, tpu.core_type = #tpu.core_type<tc>, window_params = [{transform_indices = @transform_0, window_bounds = array<i64: 8, 512>}, {transform_indices = @transform_1, window_bounds = array<i64: 8, 512>}, {transform_indices = @transform_2, window_bounds = array<i64: 8, 512>}]} {
    %c0_i32 = arith.constant 0 : i32
    %0 = arith.cmpi eq, %arg1, %c0_i32 : i32
    %1 = arith.extui %0 : i1 to i32
    %c0_i32_0 = arith.constant 0 : i32
    %2 = arith.cmpi ne, %1, %c0_i32_0 : i32
    scf.if %2 {
      %cst_9 = arith.constant 0.000000e+00 : f32
      %14 = vector.broadcast %cst_9 : f32 to vector<8x512xf32>
      %c0_10 = arith.constant 0 : index
      %c0_11 = arith.constant 0 : index
      %15 = vector.load %arg4[%c0_10, %c0_11] : memref<8x512xf32, #tpu.memory_space<vmem>>, vector<8x512xf32>
      tpu.vector_store %arg4[%c0_10, %c0_11], %14 {strides = array<i32>} : memref<8x512xf32, #tpu.memory_space<vmem>>, vector<8x512xf32>,
    } else {
    }
    %c0 = arith.constant 0 : index
    %c0_1 = arith.constant 0 : index
    %3 = vector.load %arg2[%c0, %c0_1] : memref<8x512xf32, #tpu.memory_space<vmem>>, vector<8x512xf32>
    %c0_2 = arith.constant 0 : index
    %c0_3 = arith.constant 0 : index
    %4 = vector.load %arg3[%c0_2, %c0_3] : memref<8x512xf32, #tpu.memory_space<vmem>>, vector<8x512xf32>
    %cst = arith.constant 7.500000e-01 : f32
    %5 = vector.broadcast %cst : f32 to vector<8x512xf32>
    %6 = arith.mulf %3, %5 : vector<8x512xf32>
    %7 = arith.subf %6, %4 : vector<8x512xf32>
    %8 = arith.mulf %7, %7 : vector<8x512xf32>
    %c0_4 = arith.constant 0 : index
    %c0_5 = arith.constant 0 : index
    %9 = vector.load %arg4[%c0_4, %c0_5] : memref<8x512xf32, #tpu.memory_space<vmem>>, vector<8x512xf32>
    %10 = vector.shape_cast %8 : vector<8x512xf32> to vector<1x8x512xf32>
    %cst_6 = arith.constant dense<0.000000e+00> : vector<8x512xf32>
    %11 = vector.multi_reduction <add>, %10, %cst_6 [0] : vector<1x8x512xf32> to vector<8x512xf32>
    %12 = arith.addf %9, %11 : vector<8x512xf32>
    %c0_7 = arith.constant 0 : index
    %c0_8 = arith.constant 0 : index
    %13 = vector.load %arg4[%c0_7, %c0_8] : memref<8x512xf32, #tpu.memory_space<vmem>>, vector<8x512xf32>
    tpu.vector_store %arg4[%c0_7, %c0_8], %12 {strides = array<i32>} : memref<8x512xf32, #tpu.memory_space<vmem>>, vector<8x512xf32>,
    return
  }
  func.func @transform_0(%arg0: i32, %arg1: i32) -> (i32, i32) {
    %c1_i32 = arith.constant 1 : i32
    %0 = arith.muli %arg0, %c1_i32 : i32
    %1 = arith.addi %0, %arg1 : i32
    %c0_i32 = arith.constant 0 : i32
    %c0_i32_0 = arith.constant 0 : i32
    return %1, %c0_i32 : i32, i32
  }
  func.func @transform_1(%arg0: i32, %arg1: i32) -> (i32, i32) {
    %c1_i32 = arith.constant 1 : i32
    %0 = arith.muli %arg0, %c1_i32 : i32
    %1 = arith.addi %0, %arg1 : i32
    %c0_i32 = arith.constant 0 : i32
    %c0_i32_0 = arith.constant 0 : i32
    return %1, %c0_i32 : i32, i32
  }
  func.func @transform_2(%arg0: i32, %arg1: i32) -> (i32, i32) {
    %c0_i32 = arith.constant 0 : i32
    %c0_i32_0 = arith.constant 0 : i32
    return %arg0, %c0_i32 : i32, i32
  }
}

</mosaic_0001>

<llo_original>
// kernel: tpu_custom_call.1
$region0: #{tpu_custom_call.1}
  #allocation0 [shape = 'u32[]', space=smem, size = 0x4, offset = 0x4, fixed_abs, tag = 'smem constant byte address 0x4 - core index']
  #allocation1 [shape = 'u32[144,128]{1,0:T(1,128)}', space=vmem, size = 0x12000, scoped, tag = 'internal scratch']
  %s0 = inlined_call_operand.hbm [shape: f32[16,512], index: 0, kind: input, shape index: {}]
  %s1 = inlined_call_operand.hbm [shape: f32[16,512], index: 1, kind: input, shape index: {}]
  %s2 = inlined_call_operand.hbm [shape: f32[16,512], index: 2, kind: output, shape index: {}]
  %s3 = sld [smem:[#allocation0]]
  $region53: #{tpu_custom_call.1} parent=0
    _
  %s5 = ssub.s32 1, %s3
  %s6 = scalar_select 0, %s5, %s3
  $region1: #{tpu_custom_call.1} parent=0
    #allocation2 [shape = 'u8[32768]{0}', space=vmem, size = 0x8000, scoped, tag = 'input window, operand 0']
    #allocation3 [shape = 's32[2]{0}', space=sflag, size = 0x8, scoped, tag = 'scoped memory for tpu_custom_call.1']
    #allocation4 [shape = 's32[2]{0}', space=sflag, size = 0x8, scoped, tag = 'scoped memory for tpu_custom_call.1']
    #allocation5 [shape = 'u8[32768]{0}', space=vmem, size = 0x8000, scoped, tag = 'input window, operand 1']
    #allocation6 [shape = 's32[2]{0}', space=sflag, size = 0x8, scoped, tag = 'scoped memory for tpu_custom_call.1']
    #allocation7 [shape = 'u8[32768]{0}', space=vmem, size = 0x8000, scoped, tag = 'output window, operand 0']
    %7 = vsyncpa [#allocation3], 0
    %s8 = scalar_lea.sflag [#allocation3], 1
    %9 = vsyncpa %s8, 0
    %10 = vsyncpa [#allocation6], 0
    %s11 = scalar_lea.sflag [#allocation6], 1
    %12 = vsyncpa %s11, 0
    %13 = vsyncpa [#allocation4], 0
    %s14 = scalar_lea.sflag [#allocation4], 1
    %15 = vsyncpa %s14, 0
    loop: start=0, step=1, limit=4
    $region2: #{tpu_custom_call.1} parent=1 // loop_pre_header
      _
    $region3: #{tpu_custom_call.1} parent=1 // loop_header
      %s17 = sphi 0, %s21
      %p18 = scmp.ge.s32.totalorder %s17, 4
      %s24 = sphi 0, %s36
      %s25 = sphi 0, %s32
      %s26 = sphi 0, %s24
      %s27 = sphi 0, %s25
      %s28 = sphi 0, %s26
      %s29 = sphi 0, %s27
      %s41 = sphi 0, %s43
      %s44 = sphi 0, %s41
      %s45 = sphi 0, %s44
      %s61 = sphi 0, %s45
      %s69 = sphi 0, %s71
      %s72 = sphi 0, %s69
      %s73 = sphi 0, %s72
      %s89 = sphi 0, %s73
      %s95 = sphi 0, %s97
      %s98 = sphi 0, %s95
      %s99 = sphi 0, %s98
      %s115 = sphi 0, %s99
    $region4: #{tpu_custom_call.1} parent=1 // loop_header_branch
      %20 = sbr.rel (%p18) target = $region8
    $region5: #{tpu_custom_call.1} parent=1 // loop_body
      %s22 = ssub.s32 %s17, 1
      %s23 = ssub.s32 %s17, 2
      %s30 = sadd.s32 1, %s25
      %p31 = scmp.ge.s32.totalorder %s30, 1
      %s32 = scalar_select %p31, 0, %s30
      %s33 = sadd.s32 1, %s24
      %s34 = scalar_select %p31, %s33, %s24
      %p35 = scmp.ge.s32.totalorder %s34, 2
      %s36 = scalar_select %p35, 0, %s34
      %s37 = sadd.s32 %s24, %s25
      %s38 = sadd.s32 %s36, %s32
      %s39 = ssub.s32 %s37, %s38
      %p40 = scmp.eq.s32.totalorder %s39, 0
      %s42 = sadd.s32 %s41, 1
      %s43 = scalar_select %p40, %s41, %s42
      %p46 = pneg %p40
      %p47 = scmp.eq.s32.totalorder %s17, 1
      %p48 = por %p46, %p47
      %p49 = scmp.ne.s32.totalorder %s41, %s44
      %p50 = scmp.eq.s32.totalorder %s17, 0
      %p51 = por %p49, %p50
      %p52 = scmp.ne.s32.totalorder %s41, %s44
      %p53 = scmp.eq.s32.totalorder %s22, 1
      %p54 = por %p52, %p53
      %p55 = scmp.ne.s32.totalorder %s44, %s45
      %p56 = scmp.eq.s32.totalorder %s22, 0
      %p57 = por %p55, %p56
      %p58 = scmp.ne.s32.totalorder %s44, %s45
      %p59 = scmp.eq.s32.totalorder %s23, 1
      %p60 = por %p58, %p59
      %p62 = scmp.ne.s32.totalorder %s45, %s61
      %p63 = scmp.eq.s32.totalorder %s23, 0
      %p64 = por %p62, %p63
      %s65 = sadd.s32 %s24, %s25
      %s66 = sadd.s32 %s36, %s32
      %s67 = ssub.s32 %s65, %s66
      %p68 = scmp.eq.s32.totalorder %s67, 0
      %s70 = sadd.s32 %s69, 1
      %s71 = scalar_select %p68, %s69, %s70
      %p74 = pneg %p68
      %p75 = scmp.eq.s32.totalorder %s17, 1
      %p76 = por %p74, %p75
      %p77 = scmp.ne.s32.totalorder %s69, %s72
      %p78 = scmp.eq.s32.totalorder %s17, 0
      %p79 = por %p77, %p78
      %p80 = scmp.ne.s32.totalorder %s69, %s72
      %p81 = scmp.eq.s32.totalorder %s22, 1
      %p82 = por %p80, %p81
      %p83 = scmp.ne.s32.totalorder %s72, %s73
      %p84 = scmp.eq.s32.totalorder %s22, 0
      %p85 = por %p83, %p84
      %p86 = scmp.ne.s32.totalorder %s72, %s73
      %p87 = scmp.eq.s32.totalorder %s23, 1
      %p88 = por %p86, %p87
      %p90 = scmp.ne.s32.totalorder %s73, %s89
      %p91 = scmp.eq.s32.totalorder %s23, 0
      %p92 = por %p90, %p91
      %s93 = ssub.s32 %s24, %s36
      %p94 = scmp.eq.s32.totalorder %s93, 0
      %s96 = sadd.s32 %s95, 1
      %s97 = scalar_select %p94, %s95, %s96
      %p100 = pneg %p94
      %p101 = scmp.eq.s32.totalorder %s17, 1
      %p102 = por %p100, %p101
      %p103 = scmp.ne.s32.totalorder %s95, %s98
      %p104 = scmp.eq.s32.totalorder %s17, 0
      %p105 = por %p103, %p104
      %p106 = scmp.ne.s32.totalorder %s95, %s98
      %p107 = scmp.eq.s32.totalorder %s22, 1
      %p108 = por %p106, %p107
      %p109 = scmp.ne.s32.totalorder %s98, %s99
      %p110 = scmp.eq.s32.totalorder %s22, 0
      %p111 = por %p109, %p110
      %p112 = scmp.ne.s32.totalorder %s98, %s99
      %p113 = scmp.eq.s32.totalorder %s23, 1
      %p114 = por %p112, %p113
      %p116 = scmp.ne.s32.totalorder %s99, %s115
      %p117 = scmp.eq.s32.totalorder %s23, 0
      %p118 = por %p116, %p117
      %p119 = scmp.le.s32.totalorder 1, %s17
      %p120 = scmp.lt.s32.totalorder %s17, 3
      %p121 = pnand %p119, %p120
      %p122 = pneg %p121
      // Predicated region
      $region9: #{tpu_custom_call.1} parent=5 // pred_check
        _
      $region10: #{tpu_custom_call.1} parent=5 // pred_check_branch
        %124 = sbr.rel (%p121) target = $region12
      $region11: #{tpu_custom_call.1} parent=5 // pred_region
        %s125 = ssub.s32 %s17, 1
      $region12: #{tpu_custom_call.1} parent=5 // pred_fallthru
        _
      %p126 = scmp.lt.s32.totalorder %s17, 2
      // Predicated region
      $region13: #{tpu_custom_call.1} parent=5 // pred_check
        %p127 = pneg %p126
      $region14: #{tpu_custom_call.1} parent=5 // pred_check_branch
        %129 = sbr.rel (%p127) target = $region16
      $region15: #{tpu_custom_call.1} parent=5 // pred_region
        // Predicated region
        $region17: #{tpu_custom_call.1} parent=15 // pred_check
          %p130 = pneg %p51
        $region18: #{tpu_custom_call.1} parent=15 // pred_check_branch
          %132 = sbr.rel (%p130) target = $region20
        $region19: #{tpu_custom_call.1} parent=15 // pred_region
          %s133 = sand.u32 %s41, 1
          %s134 = scalar_lea.sflag [#allocation3], %s133
          %s135 = sand.u32 %s41, 1
          %s136 = smul.addr %s135, 32
          %s137 = scalar_lea.vmem [#allocation2], %s136
          %s138 = sadd.s32 %s24, %s25
          %s140 = ssub.s32 512, 512
          %141 = vsyncadd %s134, %s140
          %s142 = smul.addr %s138, 4
          %s143 = smul.addr %s142, 128
          %s144 = scalar_lea.hbm %s0, %s143
          %s146 = sshll.u32 %s137, 4
          %s147 = int_to_ptr.vmem [resolvable:$true] %s146
          %149 = dma.hbm_to_vmem [thread:$0]  %s144, 512, %s147, %s134
        $region20: #{tpu_custom_call.1} parent=15 // pred_fallthru
          _
        // Predicated region
        $region21: #{tpu_custom_call.1} parent=15 // pred_check
          %p150 = pneg %p79
        $region22: #{tpu_custom_call.1} parent=15 // pred_check_branch
          %152 = sbr.rel (%p150) target = $region24
        $region23: #{tpu_custom_call.1} parent=15 // pred_region
          %s153 = sand.u32 %s69, 1
          %s154 = scalar_lea.sflag [#allocation6], %s153
          %s155 = sand.u32 %s69, 1
          %s156 = smul.addr %s155, 32
          %s157 = scalar_lea.vmem [#allocation5], %s156
          %s158 = sadd.s32 %s24, %s25
          %s160 = ssub.s32 512, 512
          %161 = vsyncadd %s154, %s160
          %s162 = smul.addr %s158, 4
          %s163 = smul.addr %s162, 128
          %s164 = scalar_lea.hbm %s1, %s163
          %s166 = sshll.u32 %s157, 4
          %s167 = int_to_ptr.vmem [resolvable:$true] %s166
          %169 = dma.hbm_to_vmem [thread:$0]  %s164, 512, %s167, %s154
        $region24: #{tpu_custom_call.1} parent=15 // pred_fallthru
          _
      $region16: #{tpu_custom_call.1} parent=5 // pred_fallthru
        _
      %p170 = scmp.le.s32.totalorder 1, %s17
      %p171 = scmp.lt.s32.totalorder %s17, 3
      %p172 = pnand %p170, %p171
      %p173 = pneg %p172
      // Predicated region
      $region25: #{tpu_custom_call.1} parent=5 // pred_check
        _
      $region26: #{tpu_custom_call.1} parent=5 // pred_check_branch
        %175 = sbr.rel (%p172) target = $region28
      $region27: #{tpu_custom_call.1} parent=5 // pred_region
        %s176 = ssub.s32 %s17, 1
        %s177 = sand.u32 %s44, 1
        %s178 = scalar_lea.sflag [#allocation3], %s177
        %s179 = sand.u32 %s44, 1
        %s180 = smul.addr %s179, 32
        %s181 = scalar_lea.vmem [#allocation2], %s180
        // Predicated region
        $region29: #{tpu_custom_call.1} parent=27 // pred_check
          %p182 = pneg %p57
        $region30: #{tpu_custom_call.1} parent=27 // pred_check_branch
          %184 = sbr.rel (%p182) target = $region32
        $region31: #{tpu_custom_call.1} parent=27 // pred_region
          %185 = dma.done %s178, 512
        $region32: #{tpu_custom_call.1} parent=27 // pred_fallthru
          _
        %s186 = sand.u32 %s72, 1
        %s187 = scalar_lea.sflag [#allocation6], %s186
        %s188 = sand.u32 %s72, 1
        %s189 = smul.addr %s188, 32
        %s190 = scalar_lea.vmem [#allocation5], %s189
        // Predicated region
        $region33: #{tpu_custom_call.1} parent=27 // pred_check
          %p191 = pneg %p85
        $region34: #{tpu_custom_call.1} parent=27 // pred_check_branch
          %193 = sbr.rel (%p191) target = $region36
        $region35: #{tpu_custom_call.1} parent=27 // pred_region
          %194 = dma.done %s187, 512
        $region36: #{tpu_custom_call.1} parent=27 // pred_fallthru
          _
        %s195 = sand.u32 %s44, 1
        %s196 = scalar_lea.sflag [#allocation3], %s195
        %s197 = sand.u32 %s44, 1
        %s198 = smul.addr %s197, 32
        %s199 = scalar_lea.vmem [#allocation2], %s198
        %p200 = pneg %p57
        %p201 = pneg %p54
        %s202 = sand.u32 %s72, 1
        %s203 = scalar_lea.sflag [#allocation6], %s202
        %s204 = sand.u32 %s72, 1
        %s205 = smul.addr %s204, 32
        %s206 = scalar_lea.vmem [#allocation5], %s205
        %p207 = pneg %p85
        %p208 = pneg %p82
        %p209 = pneg %p111
        %p210 = pneg %p108
        %s211 = sand.u32 %s98, 1
        %s212 = scalar_lea.sflag [#allocation4], %s211
        %s213 = sand.u32 %s98, 1
        %s214 = smul.addr %s213, 32
        %s215 = scalar_lea.vmem [#allocation7], %s214
        %s216 = sadd.s32 %s26, %s27
        %s217 = sadd.s32 %s26, %s27
        %p218 = scmp.eq.s32.totalorder %s27, 0
        // Predicated region
        $region37: #{tpu_custom_call.1} parent=27 // pred_check
          %p219 = pneg %p218
        $region38: #{tpu_custom_call.1} parent=27 // pred_check_branch
          %221 = sbr.rel (%p219) target = $region40
        $region39: #{tpu_custom_call.1} parent=27 // pred_region
          %222 = vst [vmem:[%s215] sm:$0xff] 0.0
          %223 = vst [vmem:[%s215 + $0x8] sm:$0xff] 0.0
          %224 = vst [vmem:[%s215 + $0x10] sm:$0xff] 0.0
          %225 = vst [vmem:[%s215 + $0x18] sm:$0xff] 0.0
        $region40: #{tpu_custom_call.1} parent=27 // pred_fallthru
          _
        %v226 = vld [vmem:[%s181] sm:$0xff]
        %v227 = vld [vmem:[%s181 + $0x8] sm:$0xff]
        %v228 = vld [vmem:[%s181 + $0x10] sm:$0xff]
        %v229 = vld [vmem:[%s181 + $0x18] sm:$0xff]
        %v230 = vld [vmem:[%s190] sm:$0xff]
        %v231 = vld [vmem:[%s190 + $0x8] sm:$0xff]
        %v232 = vld [vmem:[%s190 + $0x10] sm:$0xff]
        %v233 = vld [vmem:[%s190 + $0x18] sm:$0xff]
        %v234 = vmul.f32 %v226, 0.75
        %v235 = vmul.f32 %v227, 0.75
        %v236 = vmul.f32 %v228, 0.75
        %v237 = vmul.f32 %v229, 0.75
        %v238 = vsub.f32 %v234, %v230
        %v239 = vsub.f32 %v235, %v231
        %v240 = vsub.f32 %v236, %v232
        %v241 = vsub.f32 %v237, %v233
        %v242 = vmul.f32 %v238, %v238
        %v243 = vmul.f32 %v239, %v239
        %v244 = vmul.f32 %v240, %v240
        %v245 = vmul.f32 %v241, %v241
        %v246 = vld [vmem:[%s215] sm:$0xff]
        %v247 = vld [vmem:[%s215 + $0x8] sm:$0xff]
        %v248 = vld [vmem:[%s215 + $0x10] sm:$0xff]
        %v249 = vld [vmem:[%s215 + $0x18] sm:$0xff]
        %v250 = vadd.f32 %v242, 0.0
        %v251 = vadd.f32 %v243, 0.0
        %v252 = vadd.f32 %v244, 0.0
        %v253 = vadd.f32 %v245, 0.0
        %v254 = vadd.f32 %v246, %v250
        %v255 = vadd.f32 %v247, %v251
        %v256 = vadd.f32 %v248, %v252
        %v257 = vadd.f32 %v249, %v253
        %258 = vst [vmem:[%s215] sm:$0xff] %v254
        %259 = vst [vmem:[%s215 + $0x8] sm:$0xff] %v255
        %260 = vst [vmem:[%s215 + $0x10] sm:$0xff] %v256
        %261 = vst [vmem:[%s215 + $0x18] sm:$0xff] %v257
        %s262 = sand.u32 %s98, 1
        %s263 = scalar_lea.sflag [#allocation4], %s262
        %s264 = sand.u32 %s98, 1
        %s265 = smul.addr %s264, 32
        %s266 = scalar_lea.vmem [#allocation7], %s265
        // Predicated region
        $region41: #{tpu_custom_call.1} parent=27 // pred_check
          %p267 = pneg %p108
        $region42: #{tpu_custom_call.1} parent=27 // pred_check_branch
          %269 = sbr.rel (%p267) target = $region44
        $region43: #{tpu_custom_call.1} parent=27 // pred_region
          %s271 = ssub.s32 512, 512
          %272 = vsyncadd %s263, %s271
          %s273 = smul.addr %s26, 4
          %s274 = smul.addr %s273, 128
          %s275 = scalar_lea.hbm %s2, %s274
          %s277 = sshll.u32 %s266, 4
          %s278 = int_to_ptr.vmem [resolvable:$true] %s277
          %280 = dma.vmem_to_hbm [thread:$0]  %s278, 512, %s275, %s263
        $region44: #{tpu_custom_call.1} parent=27 // pred_fallthru
          _
      $region28: #{tpu_custom_call.1} parent=5 // pred_fallthru
        _
      %p281 = scmp.le.s32.totalorder 2, %s17
      // Predicated region
      $region45: #{tpu_custom_call.1} parent=5 // pred_check
        %p282 = pneg %p281
      $region46: #{tpu_custom_call.1} parent=5 // pred_check_branch
        %284 = sbr.rel (%p282) target = $region48
      $region47: #{tpu_custom_call.1} parent=5 // pred_region
        %s285 = ssub.s32 %s17, 2
        // Predicated region
        $region49: #{tpu_custom_call.1} parent=47 // pred_check
          %p286 = pneg %p114
        $region50: #{tpu_custom_call.1} parent=47 // pred_check_branch
          %288 = sbr.rel (%p286) target = $region52
        $region51: #{tpu_custom_call.1} parent=47 // pred_region
          %s289 = sand.u32 %s99, 1
          %s290 = scalar_lea.sflag [#allocation4], %s289
          %s291 = sand.u32 %s99, 1
          %s292 = smul.addr %s291, 32
          %s293 = scalar_lea.vmem [#allocation7], %s292
          %294 = dma.done %s290, 512
        $region52: #{tpu_custom_call.1} parent=47 // pred_fallthru
          _
      $region48: #{tpu_custom_call.1} parent=5 // pred_fallthru
        _
    $region6: #{tpu_custom_call.1} parent=1 // loop_footer
      %s21 = sadd.s32 1, %s17
    $region7: #{tpu_custom_call.1} parent=1 // loop_footer_branch
      %16 = sbr.rel target = $region3
    $region8: #{tpu_custom_call.1} parent=1 // loop_exit
      _
    %295 = vsyncpa [#allocation3], 1
    %s296 = scalar_lea.sflag [#allocation3], 1
    %297 = vsyncpa %s296, 1
    %298 = vsyncpa [#allocation6], 1
    %s299 = scalar_lea.sflag [#allocation6], 1
    %300 = vsyncpa %s299, 1
    %301 = vsyncpa [#allocation4], 1
    %s302 = scalar_lea.sflag [#allocation4], 1
    %303 = vsyncpa %s302, 1

</llo_original>
